<compile_context>
chip_gen: v6e
topology: v6e:2x2x1
jax: 0.10.0
libtpu: 0.0.40
codegen_flags: <defaults>
</compile_context>

<pallas_src>
import math

import jax
import jax.numpy as jnp
from jax import lax
from jax.experimental import pallas as pl
from jax.experimental.pallas import tpu as pltpu


# ----------------------------------------------------------------------------
# Pallas kernel: whole ensemble MLP, one grid step per batch tile.
# ----------------------------------------------------------------------------
def _critic_kernel(s_ref, a_ref, w1s_ref, w1a_ref, b1_ref,
                   w2_ref, b2_ref, w3t_ref, b3_ref, o_ref):
    # s_ref  : (tb, S)           state tile (f32)
    # a_ref  : (tb, A)           action tile (f32)
    # w1s_ref: (S, EHp)   bf16   layer-1 rows for state features
    # w1a_ref: (A, EHp)   bf16   layer-1 rows for action features
    # b1_ref : (1, EHp)   f32
    # w2_ref : (EHp, EHp) bf16   block-diagonal layer-2
    # b2_ref : (1, EHp)   f32
    # w3t_ref: (E, EHp)   bf16   last layer, pre-transposed (A @ B^T form)
    # b3_ref : (E, 1)     f32
    # o_ref  : (E, tb)    f32    written once, no wrapper transpose needed
    cdt = w1s_ref.dtype  # compute dtype for MXU operands (bf16)

    s = s_ref[...].astype(cdt)
    a = a_ref[...].astype(cdt)

    # Layer 1: split matmul replaces the per-call concat.
    h = jnp.dot(s, w1s_ref[...], preferred_element_type=jnp.float32)
    h = h + jnp.dot(a, w1a_ref[...], preferred_element_type=jnp.float32)
    h = jnp.maximum(h + b1_ref[...], 0.0)                       # f32 VPU

    # Layer 2: block-diagonal across the ensemble.
    h = jnp.dot(h.astype(cdt), w2_ref[...], preferred_element_type=jnp.float32)
    h = jnp.maximum(h + b2_ref[...], 0.0)                       # f32 VPU

    # Layer 3 in A @ B^T form -> result is already [E, tb].
    q_t = lax.dot_general(
        w3t_ref[...], h.astype(cdt),
        dimension_numbers=(((1,), (1,)), ((), ())),
        preferred_element_type=jnp.float32)
    o_ref[...] = (q_t + b3_ref[...]).astype(o_ref.dtype)


# ----------------------------------------------------------------------------
# One-time packing (hoisted out of the forward path; call on param update).
# ----------------------------------------------------------------------------
def pack_params(params, state_dim, *, weight_dtype=jnp.bfloat16, lane=128):
    """[E,in,H]/[E,1,H]/... -> padded, fused, lane-dense matrices."""
    w1, b1, w2, b2, w3, b3 = params
    E, in_dim, H = w1.shape
    EH = E * H
    EHp = ((EH + lane - 1) // lane) * lane        # 320 -> 384

    def pad_cols(m):
        return jnp.pad(m, ((0, 0), (0, EHp - m.shape[1])))

    eye = jnp.eye(E, dtype=jnp.float32)

    # Layer 1: columns ordered (critic e, hidden unit o); rows split by input.
    w1_flat = jnp.transpose(w1, (1, 0, 2)).reshape(in_dim, EH)      # [in, E*H]
    w1s = pad_cols(w1_flat[:state_dim]).astype(weight_dtype)        # [S, EHp]
    w1a = pad_cols(w1_flat[state_dim:]).astype(weight_dtype)        # [A, EHp]
    b1p = pad_cols(b1.reshape(1, EH)).astype(jnp.float32)           # [1, EHp]

    # Layer 2: block-diagonal across the ensemble.
    w2_bd = jnp.einsum('ef,eio->eifo', eye, w2).reshape(EH, EH)
    w2p = jnp.pad(w2_bd, ((0, EHp - EH), (0, EHp - EH))).astype(weight_dtype)
    b2p = pad_cols(b2.reshape(1, EH)).astype(jnp.float32)           # [1, EHp]

    # Layer 3: pre-transposed so the kernel emits [E, B] directly.
    w3t = jnp.einsum('ef,fh->efh', eye, w3[..., 0]).reshape(E, EH)  # [E, E*H]
    w3tp = pad_cols(w3t).astype(weight_dtype)                       # [E, EHp]
    b3c = b3.reshape(E, 1).astype(jnp.float32)                      # [E, 1]

    return (w1s, w1a, b1p, w2p, b2p, w3tp, b3c)


# ----------------------------------------------------------------------------
# Forward: only launches the kernel (no packing / concat / transpose here).
# ----------------------------------------------------------------------------
def vectorized_critic_forward(state, action, packed, *, block_b=256):
    """state: [B, S], action: [B, A], packed = pack_params(...) -> q: [E, B]."""
    w1s, w1a, b1, w2, b2, w3t, b3 = packed
    B, sd = state.shape
    ad = action.shape[1]
    EHp = w2.shape[0]
    E = w3t.shape[0]

    tb = min(B, block_b)                  # batch tile; grid=(1,) at small B
    n_b = pl.cdiv(B, tb)

    flops = 2 * B * ((sd + ad) * EHp + EHp * EHp + EHp * E)
    bytes_accessed = (state.nbytes + action.nbytes
                      + sum(int(p.nbytes) for p in packed)
                      + B * E * 4)

    return pl.pallas_call(
        _critic_kernel,
        out_shape=jax.ShapeDtypeStruct((E, B), jnp.float32),
        grid=(n_b,),
        in_specs=[
            pl.BlockSpec((tb, sd), lambda i: (i, 0)),     # state tile
            pl.BlockSpec((tb, ad), lambda i: (i, 0)),     # action tile
            pl.BlockSpec((sd, EHp), lambda i: (0, 0)),    # weights stay resident
            pl.BlockSpec((ad, EHp), lambda i: (0, 0)),
            pl.BlockSpec((1, EHp), lambda i: (0, 0)),
            pl.BlockSpec((EHp, EHp), lambda i: (0, 0)),
            pl.BlockSpec((1, EHp), lambda i: (0, 0)),
            pl.BlockSpec((E, EHp), lambda i: (0, 0)),
            pl.BlockSpec((E, 1), lambda i: (0, 0)),
        ],
        out_specs=pl.BlockSpec((E, tb), lambda i: (0, i)),
        compiler_params=pltpu.CompilerParams(
            dimension_semantics=("parallel",)),
        cost_estimate=pl.CostEstimate(
            flops=flops, transcendentals=0, bytes_accessed=bytes_accessed),
    )(state, action, w1s, w1a, b1, w2, b2, w3t, b3)


# ----------------------------------------------------------------------------
# Deterministic parameter initialization (mirrors VectorizedCritic.__init__).
# ----------------------------------------------------------------------------
def init_params(key, state_dim, action_dim, hidden_dim, num_critics):
    in_dim = state_dim + action_dim
    k1, k2, k3, k4 = jax.random.split(key, 4)

    def kaiming_uniform(k, e, fan_in, fan_out):
        # torch kaiming_uniform_ with a=sqrt(5): bound = sqrt(2/(1+5))*sqrt(3/fan_in)
        gain = math.sqrt(2.0 / (1.0 + 5.0))
        bound = gain * math.sqrt(3.0 / fan_in)
        return jax.random.uniform(k, (e, fan_in, fan_out), jnp.float32, -bound, bound)

    E = num_critics
    w1 = kaiming_uniform(k1, E, in_dim, hidden_dim)
    w2 = kaiming_uniform(k2, E, hidden_dim, hidden_dim)
    # hidden-layer biases are set to constant 0.1 in the module
    b1 = jnp.full((E, 1, hidden_dim), 0.1, jnp.float32)
    b2 = jnp.full((E, 1, hidden_dim), 0.1, jnp.float32)
    # last layer: uniform(-0.003, 0.003) for weight and bias
    w3 = jax.random.uniform(k3, (E, hidden_dim, 1), jnp.float32, -0.003, 0.003)
    b3 = jax.random.uniform(k4, (E, 1, 1), jnp.float32, -0.003, 0.003)
    return (w1, b1, w2, b2, w3, b3)


# Pure-JAX f32 reference for verification.
def reference_forward(state, action, params):
    w1, b1, w2, b2, w3, b3 = params
    sa = jnp.concatenate([state, action], axis=-1)
    x = jnp.broadcast_to(sa[None], (w1.shape[0],) + sa.shape)
    x = jnp.maximum(jnp.einsum('ebi,eio->ebo', x, w1) + b1, 0.0)
    x = jnp.maximum(jnp.einsum('ebi,eio->ebo', x, w2) + b2, 0.0)
    q = jnp.einsum('ebi,eio->ebo', x, w3) + b3
    return q[..., 0]


if __name__ == "__main__":
    # Small shapes consistent with the module's forward.
    state_dim, action_dim = 12, 4
    hidden_dim = 32
    num_critics = 10
    batch = 8

    key = jax.random.PRNGKey(0)
    kp, ks, ka = jax.random.split(key, 3)
    params = init_params(kp, state_dim, action_dim, hidden_dim, num_critics)
    state = jax.random.normal(ks, (batch, state_dim), jnp.float32)
    action = jax.random.normal(ka, (batch, action_dim), jnp.float32)

    # Pack ONCE (hoisted out of the forward path), then launch the kernel.
    packed = jax.tree.map(jax.block_until_ready,
                          pack_params(params, state_dim))

    q = vectorized_critic_forward(state, action, packed)
    q = jax.block_until_ready(q)

    q_ref = reference_forward(state, action, params)
    assert q.shape == (num_critics, batch)
    # bf16 weights / dot operands -> small quantization error vs. f32 reference.
    assert jnp.allclose(q, q_ref, atol=1e-2, rtol=1e-2), "mismatch vs reference"

    print("KERNEL_OK")
</pallas_src>

<mosaic_0001>
module attributes {stable_mosaic.version = 11 : i64} {
  func.func @_critic_kernel(%arg0: i32, %arg1: memref<8x12xf32, #tpu.memory_space<vmem>>, %arg2: memref<8x4xf32, #tpu.memory_space<vmem>>, %arg3: memref<12x384xbf16, #tpu.memory_space<vmem>>, %arg4: memref<4x384xbf16, #tpu.memory_space<vmem>>, %arg5: memref<1x384xf32, #tpu.memory_space<vmem>>, %arg6: memref<384x384xbf16, #tpu.memory_space<vmem>>, %arg7: memref<1x384xf32, #tpu.memory_space<vmem>>, %arg8: memref<10x384xbf16, #tpu.memory_space<vmem>>, %arg9: memref<10x1xf32, #tpu.memory_space<vmem>>, %arg10: memref<10x8xf32, #tpu.memory_space<vmem>>) attributes {dimension_semantics = [#tpu.dimension_semantics<parallel>], iteration_bounds = array<i64: 1>, scalar_prefetch = 0 : i64, scratch_operands = 0 : i64, tpu.core_type = #tpu.core_type<tc>, window_params = [{transform_indices = @transform_0, window_bounds = array<i64: 8, 12>}, {transform_indices = @transform_1, window_bounds = array<i64: 8, 4>}, {pipeline_mode = #tpu.pipeline_mode<synchronous>, transform_indices = @transform_2, window_bounds = array<i64: 12, 384>}, {pipeline_mode = #tpu.pipeline_mode<synchronous>, transform_indices = @transform_3, window_bounds = array<i64: 4, 384>}, {pipeline_mode = #tpu.pipeline_mode<synchronous>, transform_indices = @transform_4, window_bounds = array<i64: 1, 384>}, {pipeline_mode = #tpu.pipeline_mode<synchronous>, transform_indices = @transform_5, window_bounds = array<i64: 384, 384>}, {pipeline_mode = #tpu.pipeline_mode<synchronous>, transform_indices = @transform_6, window_bounds = array<i64: 1, 384>}, {pipeline_mode = #tpu.pipeline_mode<synchronous>, transform_indices = @transform_7, window_bounds = array<i64: 10, 384>}, {pipeline_mode = #tpu.pipeline_mode<synchronous>, transform_indices = @transform_8, window_bounds = array<i64: 10, 1>}, {transform_indices = @transform_9, window_bounds = array<i64: 10, 8>}]} {
    %c0 = arith.constant 0 : index
    %c0_0 = arith.constant 0 : index
    %0 = vector.load %arg1[%c0, %c0_0] : memref<8x12xf32, #tpu.memory_space<vmem>>, vector<8x12xf32>
    %1 = arith.truncf %0 : vector<8x12xf32> to vector<8x12xbf16>
    %c0_1 = arith.constant 0 : index
    %c0_2 = arith.constant 0 : index
    %2 = vector.load %arg2[%c0_1, %c0_2] : memref<8x4xf32, #tpu.memory_space<vmem>>, vector<8x4xf32>
    %3 = arith.truncf %2 : vector<8x4xf32> to vector<8x4xbf16>
    %c0_3 = arith.constant 0 : index
    %c0_4 = arith.constant 0 : index
    %4 = vector.load %arg3[%c0_3, %c0_4] : memref<12x384xbf16, #tpu.memory_space<vmem>>, vector<12x384xbf16>
    %cst = arith.constant dense<0.000000e+00> : vector<8x384xf32>
    %5 = tpu.matmul %1, %4, %cst {dimension_numbers = #tpu.dot_dimension_numbers<[1], [0], [0], [1], [0, 0, 1, 1], [], []>} : vector<8x12xbf16>, vector<12x384xbf16>, vector<8x384xf32> -> vector<8x384xf32>
    %c0_5 = arith.constant 0 : index
    %c0_6 = arith.constant 0 : index
    %6 = vector.load %arg4[%c0_5, %c0_6] : memref<4x384xbf16, #tpu.memory_space<vmem>>, vector<4x384xbf16>
    %cst_7 = arith.constant dense<0.000000e+00> : vector<8x384xf32>
    %7 = tpu.matmul %3, %6, %cst_7 {dimension_numbers = #tpu.dot_dimension_numbers<[1], [0], [0], [1], [0, 0, 1, 1], [], []>} : vector<8x4xbf16>, vector<4x384xbf16>, vector<8x384xf32> -> vector<8x384xf32>
    %8 = arith.addf %5, %7 : vector<8x384xf32>
    %c0_8 = arith.constant 0 : index
    %c0_9 = arith.constant 0 : index
    %9 = vector.load %arg5[%c0_8, %c0_9] : memref<1x384xf32, #tpu.memory_space<vmem>>, vector<1x384xf32>
    %10 = vector.broadcast %9 : vector<1x384xf32> to vector<8x384xf32>
    %11 = arith.addf %8, %10 : vector<8x384xf32>
    %cst_10 = arith.constant 0.000000e+00 : f32
    %12 = vector.broadcast %cst_10 : f32 to vector<8x384xf32>
    %13 = arith.maximumf %11, %12 : vector<8x384xf32>
    %14 = arith.truncf %13 : vector<8x384xf32> to vector<8x384xbf16>
    %c0_11 = arith.constant 0 : index
    %c0_12 = arith.constant 0 : index
    %15 = vector.load %arg6[%c0_11, %c0_12] : memref<384x384xbf16, #tpu.memory_space<vmem>>, vector<384x384xbf16>
    %cst_13 = arith.constant dense<0.000000e+00> : vector<8x384xf32>
    %16 = tpu.matmul %14, %15, %cst_13 {dimension_numbers = #tpu.dot_dimension_numbers<[1], [0], [0], [1], [0, 0, 1, 1], [], []>} : vector<8x384xbf16>, vector<384x384xbf16>, vector<8x384xf32> -> vector<8x384xf32>
    %c0_14 = arith.constant 0 : index
    %c0_15 = arith.constant 0 : index
    %17 = vector.load %arg7[%c0_14, %c0_15] : memref<1x384xf32, #tpu.memory_space<vmem>>, vector<1x384xf32>
    %18 = vector.broadcast %17 : vector<1x384xf32> to vector<8x384xf32>
    %19 = arith.addf %16, %18 : vector<8x384xf32>
    %cst_16 = arith.constant 0.000000e+00 : f32
    %20 = vector.broadcast %cst_16 : f32 to vector<8x384xf32>
    %21 = arith.maximumf %19, %20 : vector<8x384xf32>
    %c0_17 = arith.constant 0 : index
    %c0_18 = arith.constant 0 : index
    %22 = vector.load %arg8[%c0_17, %c0_18] : memref<10x384xbf16, #tpu.memory_space<vmem>>, vector<10x384xbf16>
    %23 = arith.truncf %21 : vector<8x384xf32> to vector<8x384xbf16>
    %cst_19 = arith.constant dense<0.000000e+00> : vector<10x8xf32>
    %24 = tpu.matmul %22, %23, %cst_19 {dimension_numbers = #tpu.dot_dimension_numbers<[1], [1], [0], [0], [0, 0, 1, 0], [], []>} : vector<10x384xbf16>, vector<8x384xbf16>, vector<10x8xf32> -> vector<10x8xf32>
    %c0_20 = arith.constant 0 : index
    %c0_21 = arith.constant 0 : index
    %25 = vector.load %arg9[%c0_20, %c0_21] : memref<10x1xf32, #tpu.memory_space<vmem>>, vector<10x1xf32>
    %26 = vector.broadcast %25 : vector<10x1xf32> to vector<10x8xf32>
    %27 = arith.addf %24, %26 : vector<10x8xf32>
    %c0_22 = arith.constant 0 : index
    %c0_23 = arith.constant 0 : index
    %28 = vector.load %arg10[%c0_22, %c0_23] : memref<10x8xf32, #tpu.memory_space<vmem>>, vector<10x8xf32>
    tpu.vector_store %arg10[%c0_22, %c0_23], %27 {strides = array<i32>} : memref<10x8xf32, #tpu.memory_space<vmem>>, vector<10x8xf32>,
    return
  }
  func.func @transform_0(%arg0: i32) -> (i32, i32) {
    %c0_i32 = arith.constant 0 : i32
    %c0_i32_0 = arith.constant 0 : i32
    return %arg0, %c0_i32 : i32, i32
  }
  func.func @transform_1(%arg0: i32) -> (i32, i32) {
    %c0_i32 = arith.constant 0 : i32
    %c0_i32_0 = arith.constant 0 : i32
    return %arg0, %c0_i32 : i32, i32
  }
  func.func @transform_2(%arg0: i32) -> (i32, i32) {
    %c0_i32 = arith.constant 0 : i32
    %c0_i32_0 = arith.constant 0 : i32
    %c0_i32_1 = arith.constant 0 : i32
    return %c0_i32, %c0_i32_0 : i32, i32
  }
  func.func @transform_3(%arg0: i32) -> (i32, i32) {
    %c0_i32 = arith.constant 0 : i32
    %c0_i32_0 = arith.constant 0 : i32
    %c0_i32_1 = arith.constant 0 : i32
    return %c0_i32, %c0_i32_0 : i32, i32
  }
  func.func @transform_4(%arg0: i32) -> (i32, i32) {
    %c0_i32 = arith.constant 0 : i32
    %c0_i32_0 = arith.constant 0 : i32
    %c0_i32_1 = arith.constant 0 : i32
    return %c0_i32, %c0_i32_0 : i32, i32
  }
  func.func @transform_5(%arg0: i32) -> (i32, i32) {
    %c0_i32 = arith.constant 0 : i32
    %c0_i32_0 = arith.constant 0 : i32
    %c0_i32_1 = arith.constant 0 : i32
    return %c0_i32, %c0_i32_0 : i32, i32
  }
  func.func @transform_6(%arg0: i32) -> (i32, i32) {
    %c0_i32 = arith.constant 0 : i32
    %c0_i32_0 = arith.constant 0 : i32
    %c0_i32_1 = arith.constant 0 : i32
    return %c0_i32, %c0_i32_0 : i32, i32
  }
  func.func @transform_7(%arg0: i32) -> (i32, i32) {
    %c0_i32 = arith.constant 0 : i32
    %c0_i32_0 = arith.constant 0 : i32
    %c0_i32_1 = arith.constant 0 : i32
    return %c0_i32, %c0_i32_0 : i32, i32
  }
  func.func @transform_8(%arg0: i32) -> (i32, i32) {
    %c0_i32 = arith.constant 0 : i32
    %c0_i32_0 = arith.constant 0 : i32
    %c0_i32_1 = arith.constant 0 : i32
    return %c0_i32, %c0_i32_0 : i32, i32
  }
  func.func @transform_9(%arg0: i32) -> (i32, i32) {
    %c0_i32 = arith.constant 0 : i32
    %c0_i32_0 = arith.constant 0 : i32
    return %c0_i32, %arg0 : i32, i32
  }
}

</mosaic_0001>

<llo_original>
// kernel: tpu_custom_call.1
$region0: #{tpu_custom_call.1}
  #allocation0 [shape = 'u32[]', space=smem, size = 0x4, offset = 0x4, fixed_abs, tag = 'smem constant byte address 0x4 - core index']
  #allocation1 [shape = 'u32[144,128]{1,0:T(1,128)}', space=vmem, size = 0x12000, scoped, tag = 'internal scratch']
  %s0 = inlined_call_operand.vmem [shape: f32[8,12], index: 0, kind: input, shape index: {}]
  %s1 = inlined_call_operand.vmem [shape: f32[8,4], index: 1, kind: input, shape index: {}]
  %s2 = inlined_call_operand.vmem [shape: bf16[12,384], index: 2, kind: input, shape index: {}]
  %s3 = inlined_call_operand.hbm [shape: bf16[4,384], index: 3, kind: input, shape index: {}]
  %s4 = inlined_call_operand.vmem [shape: f32[1,384], index: 4, kind: input, shape index: {}]
  %s5 = inlined_call_operand.hbm [shape: bf16[384,384], index: 5, kind: input, shape index: {}]
  %s6 = inlined_call_operand.vmem [shape: f32[1,384], index: 6, kind: input, shape index: {}]
  %s7 = inlined_call_operand.hbm [shape: bf16[10,384], index: 7, kind: input, shape index: {}]
  %s8 = inlined_call_operand.vmem [shape: f32[10,1], index: 8, kind: input, shape index: {}]
  %s9 = inlined_call_operand.vmem [shape: f32[10,8], index: 9, kind: output, shape index: {}]
  %s10 = sld [smem:[#allocation0]]
  $region58: #{tpu_custom_call.1} parent=0
    _
  %s12 = ssub.s32 1, %s10
  %s13 = scalar_select 0, %s12, %s10
  $region1: #{tpu_custom_call.1} parent=0
    #allocation2 [shape = 'u8[3072]{0}', space=vmem, size = 0xc00, scoped, tag = 'input window, operand 3, single buffered']
    #allocation3 [shape = 's32[1]{0}', space=sflag, size = 0x4, scoped, tag = 'scoped memory for tpu_custom_call.1']
    #allocation4 [shape = 'u8[294912]{0}', space=vmem, size = 0x48000, scoped, tag = 'input window, operand 5, single buffered']
    #allocation5 [shape = 's32[1]{0}', space=sflag, size = 0x4, scoped, tag = 'scoped memory for tpu_custom_call.1']
    #allocation6 [shape = 'u8[12288]{0}', space=vmem, size = 0x3000, scoped, tag = 'input window, operand 7, single buffered']
    %14 = vsyncpa [#allocation3], 0
    %15 = vsyncpa [#allocation5], 0
    // Predicated region
    $region2: #{tpu_custom_call.1} parent=1 // pred_check
      _
    $region3: #{tpu_custom_call.1} parent=1 // pred_check_branch
      %17 = sbr.rel (0) target = $region5
    $region4: #{tpu_custom_call.1} parent=1 // pred_region
      _
    $region5: #{tpu_custom_call.1} parent=1 // pred_fallthru
      _
    // Predicated region
    $region6: #{tpu_custom_call.1} parent=1 // pred_check
      _
    $region7: #{tpu_custom_call.1} parent=1 // pred_check_branch
      %19 = sbr.rel (0) target = $region9
    $region8: #{tpu_custom_call.1} parent=1 // pred_region
      _
    $region9: #{tpu_custom_call.1} parent=1 // pred_fallthru
      _
    // Predicated region
    $region10: #{tpu_custom_call.1} parent=1 // pred_check
      _
    $region11: #{tpu_custom_call.1} parent=1 // pred_check_branch
      %21 = sbr.rel (0) target = $region13
    $region12: #{tpu_custom_call.1} parent=1 // pred_region
      _
    $region13: #{tpu_custom_call.1} parent=1 // pred_fallthru
      _
    // Predicated region
    $region14: #{tpu_custom_call.1} parent=1 // pred_check
      _
    $region15: #{tpu_custom_call.1} parent=1 // pred_check_branch
      %23 = sbr.rel (0) target = $region17
    $region16: #{tpu_custom_call.1} parent=1 // pred_region
      %s25 = ssub.s32 96, 96
      %26 = vsyncadd [#allocation3], %s25
      %s28 = sshll.u32 [#allocation2], 4
      %s29 = int_to_ptr.vmem [resolvable:$true] %s28
      %31 = dma.hbm_to_vmem [thread:$0]  %s3, 96, %s29, [#allocation3]
    $region17: #{tpu_custom_call.1} parent=1 // pred_fallthru
      _
    // Predicated region
    $region18: #{tpu_custom_call.1} parent=1 // pred_check
      _
    $region19: #{tpu_custom_call.1} parent=1 // pred_check_branch
      %33 = sbr.rel (0) target = $region21
    $region20: #{tpu_custom_call.1} parent=1 // pred_region
      _
    $region21: #{tpu_custom_call.1} parent=1 // pred_fallthru
      _
    // Predicated region
    $region22: #{tpu_custom_call.1} parent=1 // pred_check
      _
    $region23: #{tpu_custom_call.1} parent=1 // pred_check_branch
      %35 = sbr.rel (0) target = $region25
    $region24: #{tpu_custom_call.1} parent=1 // pred_region
      %s37 = ssub.s32 9216, 9216
      %38 = vsyncadd [#allocation5], %s37
      %s39 = sshll.u32 [#allocation4], 4
      %s40 = int_to_ptr.vmem [resolvable:$true] %s39
      %45 = dma.hbm_to_vmem [thread:$0]  %s5, 9216, %s40, [#allocation5], 192, 192, 12
    $region25: #{tpu_custom_call.1} parent=1 // pred_fallthru
      _
    // Predicated region
    $region26: #{tpu_custom_call.1} parent=1 // pred_check
      _
    $region27: #{tpu_custom_call.1} parent=1 // pred_check_branch
      %47 = sbr.rel (0) target = $region29
    $region28: #{tpu_custom_call.1} parent=1 // pred_region
      _
    $region29: #{tpu_custom_call.1} parent=1 // pred_fallthru
      _
    // Predicated region
    $region30: #{tpu_custom_call.1} parent=1 // pred_check
      _
    $region31: #{tpu_custom_call.1} parent=1 // pred_check_branch
      %49 = sbr.rel (0) target = $region33
    $region32: #{tpu_custom_call.1} parent=1 // pred_region
      %s51 = ssub.s32 384, 384
      %52 = vsyncadd [#allocation5], %s51
      %s53 = sshll.u32 [#allocation6], 4
      %s54 = int_to_ptr.vmem [resolvable:$true] %s53
      %59 = dma.hbm_to_vmem [thread:$0]  %s7, 384, %s54, [#allocation5], 192, 192, 12
    $region33: #{tpu_custom_call.1} parent=1 // pred_fallthru
      _
    // Predicated region
    $region34: #{tpu_custom_call.1} parent=1 // pred_check
      _
    $region35: #{tpu_custom_call.1} parent=1 // pred_check_branch
      %61 = sbr.rel (0) target = $region37
    $region36: #{tpu_custom_call.1} parent=1 // pred_region
      _
    $region37: #{tpu_custom_call.1} parent=1 // pred_fallthru
      _
    // Predicated region
    $region38: #{tpu_custom_call.1} parent=1 // pred_check
      _
    $region39: #{tpu_custom_call.1} parent=1 // pred_check_branch
      %63 = sbr.rel (0) target = $region41
    $region40: #{tpu_custom_call.1} parent=1 // pred_region
      %64 = dma.done [#allocation3], 96
    $region41: #{tpu_custom_call.1} parent=1 // pred_fallthru
      _
    // Predicated region
    $region42: #{tpu_custom_call.1} parent=1 // pred_check
      _
    $region43: #{tpu_custom_call.1} parent=1 // pred_check_branch
      %66 = sbr.rel (0) target = $region45
    $region44: #{tpu_custom_call.1} parent=1 // pred_region
      %67 = dma.done [#allocation5], 9216
    $region45: #{tpu_custom_call.1} parent=1 // pred_fallthru
      _
    // Predicated region
    $region46: #{tpu_custom_call.1} parent=1 // pred_check
      _
    $region47: #{tpu_custom_call.1} parent=1 // pred_check_branch
      %69 = sbr.rel (0) target = $region49
    $region48: #{tpu_custom_call.1} parent=1 // pred_region
      %70 = dma.done [#allocation5], 384
    $region49: #{tpu_custom_call.1} parent=1 // pred_fallthru
      _
    %v72 = vld [vmem:[%s0] sm:$0xff]
    %v73 = vpack.c.bf16 %v72, %v72
    %v74 = vld [vmem:[%s1] sm:$0xff]
    %v75 = vpack.c.bf16 %v74, %v74
    %v76 = vld [vmem:[%s2] sm:$0xff]
    %v77 = vld [vmem:[%s2 + $0x8] sm:$0xf]
    %v78 = vld [vmem:[%s2 + $0xc] sm:$0x33]
    %v79 = vld [vmem:[%s2 + $0x14] sm:$0x3]
    %v80 = vld [vmem:[#allocation2] sm:$0x3f]
    %v82 = vcombine.high %v80, %v80
    %v84 = vunpack.c.l.s4 1983009808
    %v85 = vunpack.c.0.s8 %v84
    %v86 = vlaneseq
    %v87 = vshrl.u32 %v86, 7
    %v88 = vsub.s32 %v85, %v87
    %v89 = vrot.slane %v80, %v88
    %v91 = vunpack.c.l.s4 1983009808
    %v92 = vunpack.c.0.s8 %v91
    %v93 = vlaneseq
    %v94 = vshrl.u32 %v93, 7
    %v95 = vsub.s32 %v92, %v94
    %v96 = vrot.slane %v82, %v95
    %v97 = vcombine.high %v89, %v89
    %vm98 = vcmask 31744
    %v100 = vsel %vm98, %v75, 0
    %vm102 = vcmask 1041408
    %v104 = vsel %vm102, %v89, 0
    %v107 = vsel %vm102, %v97, 0
    %v110 = vsel %vm102, %v96, 0
    %112 = vmatprep.subr.bf16.mxu0 0
    %113 = vmatpush1.bf16.msra.mxu0 0
    %114 = vmatprep.subr.bf16.mxu0 0
    %115 = vmatpush1.bf16.msra.mxu0 0
    %116 = vmatprep.subr.bf16.mxu0 0
    %117 = vmatpush1.bf16.msra.mxu0 0
    %118 = vmatprep.subr.bf16.mxu0 0
    %119 = vmatpush1.bf16.msra.mxu0 0
    %120 = vmatprep.subr.bf16.mxu0 0
    %121 = vmatpush1.bf16.msra.mxu0 0
    %122 = vmatprep.subr.bf16.mxu0 0
    %123 = vmatpush1.bf16.msra.mxu0 0
    %124 = vmatprep.subr.bf16.mxu0 0
    %125 = vmatpush1.bf16.msra.mxu0 0
    %126 = vmatprep.subr.bf16.mxu0 %v107
    %127 = vmatpush1.bf16.msra.mxu0 %v104
    %128 = vmatprep.subr.bf16.mxu0 0
    %129 = vmatpush2.bf16.msra.mxu0 0
    %130 = vmatprep.subr.bf16.mxu0 0
    %131 = vmatpush2.bf16.msra.mxu0 0
    %132 = vmatprep.subr.bf16.mxu0 0
    %133 = vmatpush2.bf16.msra.mxu0 0
    %134 = vmatprep.subr.bf16.mxu0 0
    %135 = vmatpush2.bf16.msra.mxu0 0
    %136 = vmatprep.subr.bf16.mxu0 0
    %137 = vmatpush2.bf16.msra.mxu0 0
    %138 = vmatprep.subr.bf16.mxu0 0
    %139 = vmatpush2.bf16.msra.mxu0 0
    %140 = vmatprep.subr.bf16.mxu0 0
    %141 = vmatpush2.bf16.msra.mxu0 0
    %142 = vmatprep.subr.bf16.mxu0 0
    %143 = vmatpush2.bf16.msra.mxu0 0
    %144 = vmatprep.mubr.bf16.mxu0 0
    %145 = vmatmul.mubr.bf16.gmra.mxu0 %v100
    %v146 = vpop.f32.mrf.mxu0
    %v147 = vadd.f32 0.0, %v146
    %v148 = vpop.f32.mrf.mxu0
    %v149 = vadd.f32 0.0, %v148
    %v150 = vpop.f32.mrf.mxu0
    %v151 = vpop.f32.mrf.mxu0
    %152 = vdwg.mxu0
    %153 = vmatprep.subr.bf16.mxu0 0
    %154 = vmatpush1.bf16.msra.mxu0 0
    %155 = vmatprep.subr.bf16.mxu0 0
    %156 = vmatpush1.bf16.msra.mxu0 0
    %157 = vmatprep.subr.bf16.mxu0 0
    %158 = vmatpush1.bf16.msra.mxu0 0
    %159 = vmatprep.subr.bf16.mxu0 0
    %160 = vmatpush1.bf16.msra.mxu0 0
    %161 = vmatprep.subr.bf16.mxu0 0
    %162 = vmatpush1.bf16.msra.mxu0 0
    %163 = vmatprep.subr.bf16.mxu0 0
    %164 = vmatpush1.bf16.msra.mxu0 0
    %165 = vmatprep.subr.bf16.mxu0 0
    %166 = vmatpush1.bf16.msra.mxu0 0
    %167 = vmatprep.subr.bf16.mxu0 0
    %168 = vmatpush1.bf16.msra.mxu0 %v110
    %169 = vmatprep.subr.bf16.mxu0 0
    %170 = vmatpush2.bf16.msra.mxu0 0
    %171 = vmatprep.subr.bf16.mxu0 0
    %172 = vmatpush2.bf16.msra.mxu0 0
    %173 = vmatprep.subr.bf16.mxu0 0
    %174 = vmatpush2.bf16.msra.mxu0 0
    %175 = vmatprep.subr.bf16.mxu0 0
    %176 = vmatpush2.bf16.msra.mxu0 0
    %177 = vmatprep.subr.bf16.mxu0 0
    %178 = vmatpush2.bf16.msra.mxu0 0
    %179 = vmatprep.subr.bf16.mxu0 0
    %180 = vmatpush2.bf16.msra.mxu0 0
    %181 = vmatprep.subr.bf16.mxu0 0
    %182 = vmatpush2.bf16.msra.mxu0 0
    %183 = vmatprep.subr.bf16.mxu0 0
    %184 = vmatpush2.bf16.msra.mxu0 0
    %185 = vmatprep.mubr.bf16.mxu0 0
    %186 = vmatmul.mubr.bf16.gmra.mxu0 %v100
    %v187 = vpop.f32.mrf.mxu0
    %v188 = vadd.f32 0.0, %v187
    %v189 = vpop.f32.mrf.mxu0
    %v190 = vpop.f32.mrf.mxu0
    %v191 = vpop.f32.mrf.mxu0
    %192 = vdwg.mxu0
    %v197 = vunpack.c.l.b16 %v76
    %v198 = vunpack.c.h.b16 %v76
    %v199 = vunpack.c.l.b16 %v77
    %v200 = vunpack.c.l.b16 %v78
    %v201 = vunpack.c.h.b16 %v78
    %v202 = vunpack.c.l.b16 %v79
    %v203 = vpack.c.b16 %v200, %v197
    %v204 = vpack.c.b16 %v201, %v198
    %v205 = vpack.c.b16 %v202, %v199
    %vm206 = vcmask 97280
    %v208 = vsel %vm206, %v73, 0
    %vm210 = vcmask 1045504
    %v212 = vsel %vm210, %v203, 0
    %v215 = vsel %vm210, %v204, 0
    %v218 = vsel %vm210, %v205, 0
    %220 = vmatprep.subr.bf16.mxu0 0
    %221 = vmatpush1.bf16.msra.mxu0 0
    %222 = vmatprep.subr.bf16.mxu0 0
    %223 = vmatpush1.bf16.msra.mxu0 0
    %224 = vmatprep.subr.bf16.mxu0 0
    %225 = vmatpush1.bf16.msra.mxu0 0
    %226 = vmatprep.subr.bf16.mxu0 0
    %227 = vmatpush1.bf16.msra.mxu0 0
    %228 = vmatprep.subr.bf16.mxu0 0
    %229 = vmatpush1.bf16.msra.mxu0 0
    %230 = vmatprep.subr.bf16.mxu0 0
    %231 = vmatpush1.bf16.msra.mxu0 0
    %232 = vmatprep.subr.bf16.mxu0 0
    %233 = vmatpush1.bf16.msra.mxu0 0
    %234 = vmatprep.subr.bf16.mxu0 %v215
    %235 = vmatpush1.bf16.msra.mxu0 %v212
    %236 = vmatprep.subr.bf16.mxu0 0
    %237 = vmatpush2.bf16.msra.mxu0 0
    %238 = vmatprep.subr.bf16.mxu0 0
    %239 = vmatpush2.bf16.msra.mxu0 0
    %240 = vmatprep.subr.bf16.mxu0 0
    %241 = vmatpush2.bf16.msra.mxu0 0
    %242 = vmatprep.subr.bf16.mxu0 0
    %243 = vmatpush2.bf16.msra.mxu0 0
    %244 = vmatprep.subr.bf16.mxu0 0
    %245 = vmatpush2.bf16.msra.mxu0 0
    %246 = vmatprep.subr.bf16.mxu0 0
    %247 = vmatpush2.bf16.msra.mxu0 0
    %248 = vmatprep.subr.bf16.mxu0 0
    %249 = vmatpush2.bf16.msra.mxu0 0
    %250 = vmatprep.subr.bf16.mxu0 0
    %251 = vmatpush2.bf16.msra.mxu0 0
    %252 = vmatprep.mubr.bf16.mxu0 0
    %253 = vmatmul.mubr.bf16.gmra.mxu0 %v208
    %v254 = vpop.f32.mrf.mxu0
    %v255 = vadd.f32 %v147, %v254
    %v256 = vpop.f32.mrf.mxu0
    %v257 = vadd.f32 %v149, %v256
    %v258 = vpop.f32.mrf.mxu0
    %v259 = vpop.f32.mrf.mxu0
    %260 = vdwg.mxu0
    %261 = vmatprep.subr.bf16.mxu0 0
    %262 = vmatpush1.bf16.msra.mxu0 0
    %263 = vmatprep.subr.bf16.mxu0 0
    %264 = vmatpush1.bf16.msra.mxu0 0
    %265 = vmatprep.subr.bf16.mxu0 0
    %266 = vmatpush1.bf16.msra.mxu0 0
    %267 = vmatprep.subr.bf16.mxu0 0
    %268 = vmatpush1.bf16.msra.mxu0 0
    %269 = vmatprep.subr.bf16.mxu0 0
    %270 = vmatpush1.bf16.msra.mxu0 0
    %271 = vmatprep.subr.bf16.mxu0 0
    %272 = vmatpush1.bf16.msra.mxu0 0
    %273 = vmatprep.subr.bf16.mxu0 0
    %274 = vmatpush1.bf16.msra.mxu0 0
    %275 = vmatprep.subr.bf16.mxu0 0
    %276 = vmatpush1.bf16.msra.mxu0 %v218
    %277 = vmatprep.subr.bf16.mxu0 0
    %278 = vmatpush2.bf16.msra.mxu0 0
    %279 = vmatprep.subr.bf16.mxu0 0
    %280 = vmatpush2.bf16.msra.mxu0 0
    %281 = vmatprep.subr.bf16.mxu0 0
    %282 = vmatpush2.bf16.msra.mxu0 0
    %283 = vmatprep.subr.bf16.mxu0 0
    %284 = vmatpush2.bf16.msra.mxu0 0
    %285 = vmatprep.subr.bf16.mxu0 0
    %286 = vmatpush2.bf16.msra.mxu0 0
    %287 = vmatprep.subr.bf16.mxu0 0
    %288 = vmatpush2.bf16.msra.mxu0 0
    %289 = vmatprep.subr.bf16.mxu0 0
    %290 = vmatpush2.bf16.msra.mxu0 0
    %291 = vmatprep.subr.bf16.mxu0 0
    %292 = vmatpush2.bf16.msra.mxu0 0
    %293 = vmatprep.mubr.bf16.mxu0 0
    %294 = vmatmul.mubr.bf16.gmra.mxu0 %v208
    %v295 = vpop.f32.mrf.mxu0
    %v296 = vadd.f32 %v188, %v295
    %v297 = vpop.f32.mrf.mxu0
    %v298 = vpop.f32.mrf.mxu0
    %v299 = vpop.f32.mrf.mxu0
    %300 = vdwg.mxu0
    %v301 = vld [vmem:[%s4] sm:$0x7]
    %v303 = vlaneseq
    %v304 = vshrl.u32 %v303, 7
    %v305 = vsub.s32 0, %v304
    %v306 = vrot.slane %v301, %v305
    %v307 = vlaneseq
    %v308 = vshrl.u32 %v307, 7
    %v309 = vsub.s32 1, %v308
    %v310 = vrot.slane %v301, %v309
    %v311 = vlaneseq
    %v312 = vshrl.u32 %v311, 7
    %v313 = vsub.s32 2, %v312
    %v314 = vrot.slane %v301, %v313
    %v318 = vadd.f32 %v255, %v306
    %v319 = vadd.f32 %v257, %v310
    %v320 = vadd.f32 %v296, %v314
    %v321 = vmax.f32 %v318, 0.0
    %v322 = vmax.f32 %v319, 0.0
    %v323 = vmax.f32 %v320, 0.0
    %v324 = vpack.c.bf16 %v321, %v321
    %v325 = vpack.c.bf16 %v322, %v322
    %v326 = vpack.c.bf16 %v323, %v323
    %v327 = vld [vmem:[#allocation4] sm:$0xff]
    %v328 = vld [vmem:[#allocation4 + $0x8] sm:$0xf]
    %v329 = vld [vmem:[#allocation4 + $0xc] sm:$0xff]
    %v330 = vld [vmem:[#allocation4 + $0x14] sm:$0xf]
    %v331 = vld [vmem:[#allocation4 + $0x18] sm:$0xff]
    %v332 = vld [vmem:[#allocation4 + $0x20] sm:$0xf]
    %v333 = vld [vmem:[#allocation4 + $0x24] sm:$0xff]
    %v334 = vld [vmem:[#allocation4 + $0x2c] sm:$0xf]
    %v335 = vld [vmem:[#allocation4 + $0x30] sm:$0xff]
    %v336 = vld [vmem:[#allocation4 + $0x38] sm:$0xf]
    %v337 = vld [vmem:[#allocation4 + $0x3c] sm:$0xff]
    %v338 = vld [vmem:[#allocation4 + $0x44] sm:$0xf]
    %v339 = vld [vmem:[#allocation4 + $0x48] sm:$0xff]
    %v340 = vld [vmem:[#allocation4 + $0x50] sm:$0xf]
    %v341 = vld [vmem:[#allocation4 + $0x54] sm:$0xff]
    %v342 = vld [vmem:[#allocation4 + $0x5c] sm:$0xf]
    %v343 = vld [vmem:[#allocation4 + $0x60] sm:$0xff]
    %v344 = vld [vmem:[#allocation4 + $0x68] sm:$0xf]
    %v345 = vld [vmem:[#allocation4 + $0x6c] sm:$0xff]
    %v346 = vld [vmem:[#allocation4 + $0x74] sm:$0xf]
    %v347 = vld [vmem:[#allocation4 + $0x78] sm:$0xff]
    %v348 = vld [vmem:[#allocation4 + $0x80] sm:$0xf]
    %v349 = vld [vmem:[#allocation4 + $0x84] sm:$0xff]
    %v350 = vld [vmem:[#allocation4 + $0x8c] sm:$0xf]
    %v351 = vld [vmem:[#allocation4 + $0x90] sm:$0xff]
    %v352 = vld [vmem:[#allocation4 + $0x98] sm:$0xf]
    %v353 = vld [vmem:[#allocation4 + $0x9c] sm:$0xff]
    %v354 = vld [vmem:[#allocation4 + $0xa4] sm:$0xf]
    %v355 = vld [vmem:[#allocation4 + $0xa8] sm:$0xff]
    %v356 = vld [vmem:[#allocation4 + $0xb0] sm:$0xf]
    %v357 = vld [vmem:[#allocation4 + $0xb4] sm:$0xff]
    %v358 = vld [vmem:[#allocation4 + $0xbc] sm:$0xf]
    %v359 = vld [vmem:[#allocation4 + $0xc0] sm:$0xff]
    %v360 = vld [vmem:[#allocation4 + $0xc8] sm:$0xf]
    %v361 = vld [vmem:[#allocation4 + $0xcc] sm:$0xff]
    %v362 = vld [vmem:[#allocation4 + $0xd4] sm:$0xf]
    %v363 = vld [vmem:[#allocation4 + $0xd8] sm:$0xff]
    %v364 = vld [vmem:[#allocation4 + $0xe0] sm:$0xf]
    %v365 = vld [vmem:[#allocation4 + $0xe4] sm:$0xff]
    %v366 = vld [vmem:[#allocation4 + $0xec] sm:$0xf]
    %v367 = vld [vmem:[#allocation4 + $0xf0] sm:$0xff]
    %v368 = vld [vmem:[#allocation4 + $0xf8] sm:$0xf]
    %v369 = vld [vmem:[#allocation4 + $0xfc] sm:$0xff]
    %v370 = vld [vmem:[#allocation4 + $0x104] sm:$0xf]
    %v371 = vld [vmem:[#allocation4 + $0x108] sm:$0xff]
    %v372 = vld [vmem:[#allocation4 + $0x110] sm:$0xf]
    %v373 = vld [vmem:[#allocation4 + $0x114] sm:$0xff]
    %v374 = vld [vmem:[#allocation4 + $0x11c] sm:$0xf]
    %v375 = vld [vmem:[#allocation4 + $0x120] sm:$0xff]
    %v376 = vld [vmem:[#allocation4 + $0x128] sm:$0xf]
    %v377 = vld [vmem:[#allocation4 + $0x12c] sm:$0xff]
    %v378 = vld [vmem:[#allocation4 + $0x134] sm:$0xf]
    %v379 = vld [vmem:[#allocation4 + $0x138] sm:$0xff]
    %v380 = vld [vmem:[#allocation4 + $0x140] sm:$0xf]
    %v381 = vld [vmem:[#allocation4 + $0x144] sm:$0xff]
    %v382 = vld [vmem:[#allocation4 + $0x14c] sm:$0xf]
    %v383 = vld [vmem:[#allocation4 + $0x150] sm:$0xff]
    %v384 = vld [vmem:[#allocation4 + $0x158] sm:$0xf]
    %v385 = vld [vmem:[#allocation4 + $0x15c] sm:$0xff]
    %v386 = vld [vmem:[#allocation4 + $0x164] sm:$0xf]
    %v387 = vld [vmem:[#allocation4 + $0x168] sm:$0xff]
    %v388 = vld [vmem:[#allocation4 + $0x170] sm:$0xf]
    %v389 = vld [vmem:[#allocation4 + $0x174] sm:$0xff]
    %v390 = vld [vmem:[#allocation4 + $0x17c] sm:$0xf]
    %v391 = vld [vmem:[#allocation4 + $0x180] sm:$0xff]
    %v392 = vld [vmem:[#allocation4 + $0x188] sm:$0xf]
    %v393 = vld [vmem:[#allocation4 + $0x18c] sm:$0xff]
    %v394 = vld [vmem:[#allocation4 + $0x194] sm:$0xf]
    %v395 = vld [vmem:[#allocation4 + $0x198] sm:$0xff]
    %v396 = vld [vmem:[#allocation4 + $0x1a0] sm:$0xf]
    %v397 = vld [vmem:[#allocation4 + $0x1a4] sm:$0xff]
    %v398 = vld [vmem:[#allocation4 + $0x1ac] sm:$0xf]
    %v399 = vld [vmem:[#allocation4 + $0x1b0] sm:$0xff]
    %v400 = vld [vmem:[#allocation4 + $0x1b8] sm:$0xf]
    %v401 = vld [vmem:[#allocation4 + $0x1bc] sm:$0xff]
    %v402 = vld [vmem:[#allocation4 + $0x1c4] sm:$0xf]
    %v403 = vld [vmem:[#allocation4 + $0x1c8] sm:$0xff]
    %v404 = vld [vmem:[#allocation4 + $0x1d0] sm:$0xf]
    %v405 = vld [vmem:[#allocation4 + $0x1d4] sm:$0xff]
    %v406 = vld [vmem:[#allocation4 + $0x1dc] sm:$0xf]
    %v407 = vld [vmem:[#allocation4 + $0x1e0] sm:$0xff]
    %v408 = vld [vmem:[#allocation4 + $0x1e8] sm:$0xf]
    %v409 = vld [vmem:[#allocation4 + $0x1ec] sm:$0xff]
    %v410 = vld [vmem:[#allocation4 + $0x1f4] sm:$0xf]
    %v411 = vld [vmem:[#allocation4 + $0x1f8] sm:$0xff]
    %v412 = vld [vmem:[#allocation4 + $0x200] sm:$0xf]
    %v413 = vld [vmem:[#allocation4 + $0x204] sm:$0xff]
    %v414 = vld [vmem:[#allocation4 + $0x20c] sm:$0xf]
    %v415 = vld [vmem:[#allocation4 + $0x210] sm:$0xff]
    %v416 = vld [vmem:[#allocation4 + $0x218] sm:$0xf]
    %v417 = vld [vmem:[#allocation4 + $0x21c] sm:$0xff]
    %v418 = vld [vmem:[#allocation4 + $0x224] sm:$0xf]
    %v419 = vld [vmem:[#allocation4 + $0x228] sm:$0xff]
    %v420 = vld [vmem:[#allocation4 + $0x230] sm:$0xf]
    %v421 = vld [vmem:[#allocation4 + $0x234] sm:$0xff]
    %v422 = vld [vmem:[#allocation4 + $0x23c] sm:$0xf]
    %v423 = vld [vmem:[%s6] sm:$0x7]
    %v425 = vlaneseq
    %v426 = vshrl.u32 %v425, 7
    %v427 = vsub.s32 0, %v426
    %v428 = vrot.slane %v423, %v427
    %v429 = vlaneseq
    %v430 = vshrl.u32 %v429, 7
    %v431 = vsub.s32 1, %v430
    %v432 = vrot.slane %v423, %v431
    %v433 = vlaneseq
    %v434 = vshrl.u32 %v433, 7
    %v435 = vsub.s32 2, %v434
    %v436 = vrot.slane %v423, %v435
    %v536 = vunpack.c.l.b16 %v327
    %v537 = vunpack.c.h.b16 %v327
    %v538 = vunpack.c.l.b16 %v328
    %v539 = vunpack.c.l.b16 %v329
    %v540 = vunpack.c.h.b16 %v329
    %v541 = vunpack.c.l.b16 %v330
    %v542 = vunpack.c.l.b16 %v331
    %v543 = vunpack.c.h.b16 %v331
    %v544 = vunpack.c.l.b16 %v332
    %v545 = vunpack.c.l.b16 %v333
    %v546 = vunpack.c.h.b16 %v333
    %v547 = vunpack.c.l.b16 %v334
    %v548 = vunpack.c.l.b16 %v335
    %v549 = vunpack.c.h.b16 %v335
    %v550 = vunpack.c.l.b16 %v336
    %v551 = vunpack.c.l.b16 %v337
    %v552 = vunpack.c.h.b16 %v337
    %v553 = vunpack.c.l.b16 %v338
    %v554 = vunpack.c.l.b16 %v339
    %v555 = vunpack.c.h.b16 %v339
    %v556 = vunpack.c.l.b16 %v340
    %v557 = vunpack.c.l.b16 %v341
    %v558 = vunpack.c.h.b16 %v341
    %v559 = vunpack.c.l.b16 %v342
    %v560 = vunpack.c.l.b16 %v343
    %v561 = vunpack.c.h.b16 %v343
    %v562 = vunpack.c.l.b16 %v344
    %v563 = vunpack.c.l.b16 %v345
    %v564 = vunpack.c.h.b16 %v345
    %v565 = vunpack.c.l.b16 %v346
    %v566 = vunpack.c.l.b16 %v347
    %v567 = vunpack.c.h.b16 %v347
    %v568 = vunpack.c.l.b16 %v348
    %v569 = vunpack.c.l.b16 %v349
    %v570 = vunpack.c.h.b16 %v349
    %v571 = vunpack.c.l.b16 %v350
    %v572 = vunpack.c.l.b16 %v351
    %v573 = vunpack.c.h.b16 %v351
    %v574 = vunpack.c.l.b16 %v352
    %v575 = vunpack.c.l.b16 %v353
    %v576 = vunpack.c.h.b16 %v353
    %v577 = vunpack.c.l.b16 %v354
    %v578 = vunpack.c.l.b16 %v355
    %v579 = vunpack.c.h.b16 %v355
    %v580 = vunpack.c.l.b16 %v356
    %v581 = vunpack.c.l.b16 %v357
    %v582 = vunpack.c.h.b16 %v357
    %v583 = vunpack.c.l.b16 %v358
    %v584 = vunpack.c.l.b16 %v359
    %v585 = vunpack.c.h.b16 %v359
    %v586 = vunpack.c.l.b16 %v360
    %v587 = vunpack.c.l.b16 %v361
    %v588 = vunpack.c.h.b16 %v361
    %v589 = vunpack.c.l.b16 %v362
    %v590 = vunpack.c.l.b16 %v363
    %v591 = vunpack.c.h.b16 %v363
    %v592 = vunpack.c.l.b16 %v364
    %v593 = vunpack.c.l.b16 %v365
    %v594 = vunpack.c.h.b16 %v365
    %v595 = vunpack.c.l.b16 %v366
    %v596 = vunpack.c.l.b16 %v367
    %v597 = vunpack.c.h.b16 %v367
    %v598 = vunpack.c.l.b16 %v368
    %v599 = vunpack.c.l.b16 %v369
    %v600 = vunpack.c.h.b16 %v369
    %v601 = vunpack.c.l.b16 %v370
    %v602 = vunpack.c.l.b16 %v371
    %v603 = vunpack.c.h.b16 %v371
    %v604 = vunpack.c.l.b16 %v372
    %v605 = vunpack.c.l.b16 %v373
    %v606 = vunpack.c.h.b16 %v373
    %v607 = vunpack.c.l.b16 %v374
    %v608 = vunpack.c.l.b16 %v375
    %v609 = vunpack.c.h.b16 %v375
    %v610 = vunpack.c.l.b16 %v376
    %v611 = vunpack.c.l.b16 %v377
    %v612 = vunpack.c.h.b16 %v377
    %v613 = vunpack.c.l.b16 %v378
    %v614 = vunpack.c.l.b16 %v379
    %v615 = vunpack.c.h.b16 %v379
    %v616 = vunpack.c.l.b16 %v380
    %v617 = vunpack.c.l.b16 %v381
    %v618 = vunpack.c.h.b16 %v381
    %v619 = vunpack.c.l.b16 %v382
    %v620 = vunpack.c.l.b16 %v383
    %v621 = vunpack.c.h.b16 %v383
    %v622 = vunpack.c.l.b16 %v384
    %v623 = vunpack.c.l.b16 %v385
    %v624 = vunpack.c.h.b16 %v385
    %v625 = vunpack.c.l.b16 %v386
    %v626 = vunpack.c.l.b16 %v387
    %v627 = vunpack.c.h.b16 %v387
    %v628 = vunpack.c.l.b16 %v388
    %v629 = vunpack.c.l.b16 %v389
    %v630 = vunpack.c.h.b16 %v389
    %v631 = vunpack.c.l.b16 %v390
    %v632 = vunpack.c.l.b16 %v391
    %v633 = vunpack.c.h.b16 %v391
    %v634 = vunpack.c.l.b16 %v392
    %v635 = vunpack.c.l.b16 %v393
    %v636 = vunpack.c.h.b16 %v393
    %v637 = vunpack.c.l.b16 %v394
    %v638 = vunpack.c.l.b16 %v395
    %v639 = vunpack.c.h.b16 %v395
    %v640 = vunpack.c.l.b16 %v396
    %v641 = vunpack.c.l.b16 %v397
    %v642 = vunpack.c.h.b16 %v397
    %v643 = vunpack.c.l.b16 %v398
    %v644 = vunpack.c.l.b16 %v399
    %v645 = vunpack.c.h.b16 %v399
    %v646 = vunpack.c.l.b16 %v400
    %v647 = vunpack.c.l.b16 %v401
    %v648 = vunpack.c.h.b16 %v401
    %v649 = vunpack.c.l.b16 %v402
    %v650 = vunpack.c.l.b16 %v403
    %v651 = vunpack.c.h.b16 %v403
    %v652 = vunpack.c.l.b16 %v404
    %v653 = vunpack.c.l.b16 %v405
    %v654 = vunpack.c.h.b16 %v405
    %v655 = vunpack.c.l.b16 %v406
    %v656 = vunpack.c.l.b16 %v407
    %v657 = vunpack.c.h.b16 %v407
    %v658 = vunpack.c.l.b16 %v408
    %v659 = vunpack.c.l.b16 %v409
    %v660 = vunpack.c.h.b16 %v409
    %v661 = vunpack.c.l.b16 %v410
    %v662 = vunpack.c.l.b16 %v411
    %v663 = vunpack.c.h.b16 %v411
    %v664 = vunpack.c.l.b16 %v412
    %v665 = vunpack.c.l.b16 %v413
    %v666 = vunpack.c.h.b16 %v413
    %v667 = vunpack.c.l.b16 %v414
    %v668 = vunpack.c.l.b16 %v415
    %v669 = vunpack.c.h.b16 %v415
    %v670 = vunpack.c.l.b16 %v416
    %v671 = vunpack.c.l.b16 %v417
    %v672 = vunpack.c.h.b16 %v417
    %v673 = vunpack.c.l.b16 %v418
    %v674 = vunpack.c.l.b16 %v419
    %v675 = vunpack.c.h.b16 %v419
    %v676 = vunpack.c.l.b16 %v420
    %v677 = vunpack.c.l.b16 %v421
    %v678 = vunpack.c.h.b16 %v421
    %v679 = vunpack.c.l.b16 %v422
    %v680 = vpack.c.b16 %v539, %v536
    %v681 = vpack.c.b16 %v540, %v537
    %v682 = vpack.c.b16 %v541, %v538
    %v683 = vpack.c.b16 %v545, %v542
    %v684 = vpack.c.b16 %v546, %v543
    %v685 = vpack.c.b16 %v547, %v544
    %v686 = vpack.c.b16 %v551, %v548
    %v687 = vpack.c.b16 %v552, %v549
    %v688 = vpack.c.b16 %v553, %v550
    %v689 = vpack.c.b16 %v557, %v554
    %v690 = vpack.c.b16 %v558, %v555
    %v691 = vpack.c.b16 %v559, %v556
    %v692 = vpack.c.b16 %v563, %v560
    %v693 = vpack.c.b16 %v564, %v561
    %v694 = vpack.c.b16 %v565, %v562
    %v695 = vpack.c.b16 %v569, %v566
    %v696 = vpack.c.b16 %v570, %v567
    %v697 = vpack.c.b16 %v571, %v568
    %v698 = vpack.c.b16 %v575, %v572
    %v699 = vpack.c.b16 %v576, %v573
    %v700 = vpack.c.b16 %v577, %v574
    %v701 = vpack.c.b16 %v581, %v578
    %v702 = vpack.c.b16 %v582, %v579
    %v703 = vpack.c.b16 %v583, %v580
    %v704 = vpack.c.b16 %v587, %v584
    %v705 = vpack.c.b16 %v588, %v585
    %v706 = vpack.c.b16 %v589, %v586
    %v707 = vpack.c.b16 %v593, %v590
    %v708 = vpack.c.b16 %v594, %v591
    %v709 = vpack.c.b16 %v595, %v592
    %v710 = vpack.c.b16 %v599, %v596
    %v711 = vpack.c.b16 %v600, %v597
    %v712 = vpack.c.b16 %v601, %v598
    %v713 = vpack.c.b16 %v605, %v602
    %v714 = vpack.c.b16 %v606, %v603
    %v715 = vpack.c.b16 %v607, %v604
    %v716 = vpack.c.b16 %v611, %v608
    %v717 = vpack.c.b16 %v612, %v609
    %v718 = vpack.c.b16 %v613, %v610
    %v719 = vpack.c.b16 %v617, %v614
    %v720 = vpack.c.b16 %v618, %v615
    %v721 = vpack.c.b16 %v619, %v616
    %v722 = vpack.c.b16 %v623, %v620
    %v723 = vpack.c.b16 %v624, %v621
    %v724 = vpack.c.b16 %v625, %v622
    %v725 = vpack.c.b16 %v629, %v626
    %v726 = vpack.c.b16 %v630, %v627
    %v727 = vpack.c.b16 %v631, %v628
    %v728 = vpack.c.b16 %v635, %v632
    %v729 = vpack.c.b16 %v636, %v633
    %v730 = vpack.c.b16 %v637, %v634
    %v731 = vpack.c.b16 %v641, %v638
    %v732 = vpack.c.b16 %v642, %v639
    %v733 = vpack.c.b16 %v643, %v640
    %v734 = vpack.c.b16 %v647, %v644
    %v735 = vpack.c.b16 %v648, %v645
    %v736 = vpack.c.b16 %v649, %v646
    %v737 = vpack.c.b16 %v653, %v650
    %v738 = vpack.c.b16 %v654, %v651
    %v739 = vpack.c.b16 %v655, %v652
    %v740 = vpack.c.b16 %v659, %v656
    %v741 = vpack.c.b16 %v660, %v657
    %v742 = vpack.c.b16 %v661, %v658
    %v743 = vpack.c.b16 %v665, %v662
    %v744 = vpack.c.b16 %v666, %v663
    %v745 = vpack.c.b16 %v667, %v664
    %v746 = vpack.c.b16 %v671, %v668
    %v747 = vpack.c.b16 %v672, %v669
    %v748 = vpack.c.b16 %v673, %v670
    %v749 = vpack.c.b16 %v677, %v674
    %v750 = vpack.c.b16 %v678, %v675
    %v751 = vpack.c.b16 %v679, %v676
    %824 = vmatprep.subr.bf16.mxu0 %v702
    %825 = vmatpush1.bf16.msra.mxu0 %v701
    %826 = vmatprep.subr.bf16.mxu0 %v699
    %827 = vmatpush1.bf16.msra.mxu0 %v698
    %828 = vmatprep.subr.bf16.mxu0 %v696
    %829 = vmatpush1.bf16.msra.mxu0 %v695
    %830 = vmatprep.subr.bf16.mxu0 %v693
    %831 = vmatpush1.bf16.msra.mxu0 %v692
    %832 = vmatprep.subr.bf16.mxu0 %v690
    %833 = vmatpush1.bf16.msra.mxu0 %v689
    %834 = vmatprep.subr.bf16.mxu0 %v687
    %835 = vmatpush1.bf16.msra.mxu0 %v686
    %836 = vmatprep.subr.bf16.mxu0 %v684
    %837 = vmatpush1.bf16.msra.mxu0 %v683
    %838 = vmatprep.subr.bf16.mxu0 %v681
    %839 = vmatpush1.bf16.msra.mxu0 %v680
    %840 = vmatprep.subr.bf16.mxu0 %v726
    %841 = vmatpush2.bf16.msra.mxu0 %v725
    %842 = vmatprep.subr.bf16.mxu0 %v723
    %843 = vmatpush2.bf16.msra.mxu0 %v722
    %844 = vmatprep.subr.bf16.mxu0 %v720
    %845 = vmatpush2.bf16.msra.mxu0 %v719
    %846 = vmatprep.subr.bf16.mxu0 %v717
    %847 = vmatpush2.bf16.msra.mxu0 %v716
    %848 = vmatprep.subr.bf16.mxu0 %v714
    %849 = vmatpush2.bf16.msra.mxu0 %v713
    %850 = vmatprep.subr.bf16.mxu0 %v711
    %851 = vmatpush2.bf16.msra.mxu0 %v710
    %852 = vmatprep.subr.bf16.mxu0 %v708
    %853 = vmatpush2.bf16.msra.mxu0 %v707
    %854 = vmatprep.subr.bf16.mxu0 %v705
    %855 = vmatpush2.bf16.msra.mxu0 %v704
    %856 = vmatprep.mubr.bf16.mxu0 %v325
    %857 = vmatmul.mubr.bf16.gmra.mxu0 %v324
    %v858 = vpop.f32.mrf.mxu0
    %v859 = vadd.f32 %v428, %v858
    %v860 = vpop.f32.mrf.mxu0
    %v861 = vadd.f32 %v432, %v860
    %v862 = vpop.f32.mrf.mxu0
    %v863 = vpop.f32.mrf.mxu0
    %864 = vdwg.mxu0
    %865 = vmatprep.subr.bf16.mxu0 %v750
    %866 = vmatpush1.bf16.msra.mxu0 %v749
    %867 = vmatprep.subr.bf16.mxu0 %v747
    %868 = vmatpush1.bf16.msra.mxu0 %v746
    %869 = vmatprep.subr.bf16.mxu0 %v744
    %870 = vmatpush1.bf16.msra.mxu0 %v743
    %871 = vmatprep.subr.bf16.mxu0 %v741
    %872 = vmatpush1.bf16.msra.mxu0 %v740
    %873 = vmatprep.subr.bf16.mxu0 %v738
    %874 = vmatpush1.bf16.msra.mxu0 %v737
    %875 = vmatprep.subr.bf16.mxu0 %v735
    %876 = vmatpush1.bf16.msra.mxu0 %v734
    %877 = vmatprep.subr.bf16.mxu0 %v732
    %878 = vmatpush1.bf16.msra.mxu0 %v731
    %879 = vmatprep.subr.bf16.mxu0 %v729
    %880 = vmatpush1.bf16.msra.mxu0 %v728
    %881 = vmatprep.subr.bf16.mxu0 0
    %882 = vmatpush2.bf16.msra.mxu0 0
    %883 = vmatprep.subr.bf16.mxu0 0
    %884 = vmatpush2.bf16.msra.mxu0 0
    %885 = vmatprep.subr.bf16.mxu0 0
    %886 = vmatpush2.bf16.msra.mxu0 0
    %887 = vmatprep.subr.bf16.mxu0 0
    %888 = vmatpush2.bf16.msra.mxu0 0
    %889 = vmatprep.subr.bf16.mxu0 0
    %890 = vmatpush2.bf16.msra.mxu0 0
    %891 = vmatprep.subr.bf16.mxu0 0
    %892 = vmatpush2.bf16.msra.mxu0 0
    %893 = vmatprep.subr.bf16.mxu0 0
    %894 = vmatpush2.bf16.msra.mxu0 0
    %895 = vmatprep.subr.bf16.mxu0 0
    %896 = vmatpush2.bf16.msra.mxu0 0
    %897 = vmatprep.mubr.bf16.mxu0 0
    %898 = vmatmul.mubr.bf16.gmra.mxu0 %v326
    %v899 = vpop.f32.mrf.mxu0
    %v900 = vadd.f32 %v859, %v899
    %v901 = vpop.f32.mrf.mxu0
    %v902 = vadd.f32 %v861, %v901
    %v903 = vpop.f32.mrf.mxu0
    %v904 = vpop.f32.mrf.mxu0
    %905 = vdwg.mxu0
    %906 = vmatprep.subr.bf16.mxu0 0
    %907 = vmatpush1.bf16.msra.mxu0 %v703
    %908 = vmatprep.subr.bf16.mxu0 0
    %909 = vmatpush1.bf16.msra.mxu0 %v700
    %910 = vmatprep.subr.bf16.mxu0 0
    %911 = vmatpush1.bf16.msra.mxu0 %v697
    %912 = vmatprep.subr.bf16.mxu0 0
    %913 = vmatpush1.bf16.msra.mxu0 %v694
    %914 = vmatprep.subr.bf16.mxu0 0
    %915 = vmatpush1.bf16.msra.mxu0 %v691
    %916 = vmatprep.subr.bf16.mxu0 0
    %917 = vmatpush1.bf16.msra.mxu0 %v688
    %918 = vmatprep.subr.bf16.mxu0 0
    %919 = vmatpush1.bf16.msra.mxu0 %v685
    %920 = vmatprep.subr.bf16.mxu0 0
    %921 = vmatpush1.bf16.msra.mxu0 %v682
    %922 = vmatprep.subr.bf16.mxu0 0
    %923 = vmatpush2.bf16.msra.mxu0 %v727
    %924 = vmatprep.subr.bf16.mxu0 0
    %925 = vmatpush2.bf16.msra.mxu0 %v724
    %926 = vmatprep.subr.bf16.mxu0 0
    %927 = vmatpush2.bf16.msra.mxu0 %v721
    %928 = vmatprep.subr.bf16.mxu0 0
    %929 = vmatpush2.bf16.msra.mxu0 %v718
    %930 = vmatprep.subr.bf16.mxu0 0
    %931 = vmatpush2.bf16.msra.mxu0 %v715
    %932 = vmatprep.subr.bf16.mxu0 0
    %933 = vmatpush2.bf16.msra.mxu0 %v712
    %934 = vmatprep.subr.bf16.mxu0 0
    %935 = vmatpush2.bf16.msra.mxu0 %v709
    %936 = vmatprep.subr.bf16.mxu0 0
    %937 = vmatpush2.bf16.msra.mxu0 %v706
    %938 = vmatprep.mubr.bf16.mxu0 %v325
    %939 = vmatmul.mubr.bf16.gmra.mxu0 %v324
    %v940 = vpop.f32.mrf.mxu0
    %v941 = vadd.f32 %v436, %v940
    %v942 = vpop.f32.mrf.mxu0
    %v943 = vpop.f32.mrf.mxu0
    %v944 = vpop.f32.mrf.mxu0
    %945 = vdwg.mxu0
    %946 = vmatprep.subr.bf16.mxu0 0
    %947 = vmatpush1.bf16.msra.mxu0 %v751
    %948 = vmatprep.subr.bf16.mxu0 0
    %949 = vmatpush1.bf16.msra.mxu0 %v748
    %950 = vmatprep.subr.bf16.mxu0 0
    %951 = vmatpush1.bf16.msra.mxu0 %v745
    %952 = vmatprep.subr.bf16.mxu0 0
    %953 = vmatpush1.bf16.msra.mxu0 %v742
    %954 = vmatprep.subr.bf16.mxu0 0
    %955 = vmatpush1.bf16.msra.mxu0 %v739
    %956 = vmatprep.subr.bf16.mxu0 0
    %957 = vmatpush1.bf16.msra.mxu0 %v736
    %958 = vmatprep.subr.bf16.mxu0 0
    %959 = vmatpush1.bf16.msra.mxu0 %v733
    %960 = vmatprep.subr.bf16.mxu0 0
    %961 = vmatpush1.bf16.msra.mxu0 %v730
    %962 = vmatprep.subr.bf16.mxu0 0
    %963 = vmatpush2.bf16.msra.mxu0 0
    %964 = vmatprep.subr.bf16.mxu0 0
    %965 = vmatpush2.bf16.msra.mxu0 0
    %966 = vmatprep.subr.bf16.mxu0 0
    %967 = vmatpush2.bf16.msra.mxu0 0
    %968 = vmatprep.subr.bf16.mxu0 0
    %969 = vmatpush2.bf16.msra.mxu0 0
    %970 = vmatprep.subr.bf16.mxu0 0
    %971 = vmatpush2.bf16.msra.mxu0 0
    %972 = vmatprep.subr.bf16.mxu0 0
    %973 = vmatpush2.bf16.msra.mxu0 0
    %974 = vmatprep.subr.bf16.mxu0 0
    %975 = vmatpush2.bf16.msra.mxu0 0
    %976 = vmatprep.subr.bf16.mxu0 0
    %977 = vmatpush2.bf16.msra.mxu0 0
    %978 = vmatprep.mubr.bf16.mxu0 0
    %979 = vmatmul.mubr.bf16.gmra.mxu0 %v326
    %v980 = vpop.f32.mrf.mxu0
    %v981 = vadd.f32 %v941, %v980
    %v982 = vpop.f32.mrf.mxu0
    %v983 = vpop.f32.mrf.mxu0
    %v984 = vpop.f32.mrf.mxu0
    %985 = vdwg.mxu0
    %v986 = vmax.f32 %v900, 0.0
    %v987 = vmax.f32 %v902, 0.0
    %v988 = vmax.f32 %v981, 0.0
    %v989 = vld [vmem:[#allocation6] sm:$0xff]
    %v990 = vld [vmem:[#allocation6 + $0x8] sm:$0xf]
    %v991 = vld [vmem:[#allocation6 + $0xc] sm:$0x11]
    %v992 = vld [vmem:[#allocation6 + $0x14] sm:$0x1]
    %v993 = vpack.c.bf16 %v986, %v986
    %v994 = vpack.c.bf16 %v987, %v987
    %v995 = vpack.c.bf16 %v988, %v988
    %v996 = vld [vmem:[%s8] sm:$0xff]
    %v997 = vld [vmem:[%s8 + $0x8] sm:$0x3]
    %999 = vset.pattern.permute.xlu0 0
    %1000 = vperm.xlu0 %999, %v996
    %v1001 = vpop.permute.xlu0 %1000
    %1004 = vset.pattern.permute.xlu0 0
    %1005 = vperm.xlu0 %1004, %v997
    %v1006 = vpop.permute.xlu0 %1005
    %v1012 = vunpack.c.l.b16 %v989
    %v1013 = vunpack.c.h.b16 %v989
    %v1014 = vunpack.c.l.b16 %v990
    %v1015 = vunpack.c.l.b16 %v991
    %v1016 = vunpack.c.h.b16 %v991
    %v1017 = vunpack.c.l.b16 %v992
    %v1018 = vpack.c.b16 %v1015, %v1012
    %v1019 = vpack.c.b16 %v1016, %v1013
    %v1020 = vpack.c.b16 %v1017, %v1014
    %1024 = vmatprep.subr.bf16.mxu0 0
    %1025 = vmatpush1.bf16.xpose.msra.mxu0 0
    %1026 = vmatprep.subr.bf16.mxu0 0
    %1027 = vmatpush1.bf16.xpose.msra.mxu0 0
    %1028 = vmatprep.subr.bf16.mxu0 0
    %1029 = vmatpush1.bf16.xpose.msra.mxu0 0
    %1030 = vmatprep.subr.bf16.mxu0 0
    %1031 = vmatpush1.bf16.xpose.msra.mxu0 0
    %1032 = vmatprep.subr.bf16.mxu0 0
    %1033 = vmatpush1.bf16.xpose.msra.mxu0 0
    %1034 = vmatprep.subr.bf16.mxu0 0
    %1035 = vmatpush1.bf16.xpose.msra.mxu0 0
    %1036 = vmatprep.subr.bf16.mxu0 0
    %1037 = vmatpush1.bf16.xpose.msra.mxu0 0
    %1038 = vmatprep.subr.bf16.mxu0 %v994
    %1039 = vmatpush1.bf16.xpose.msra.mxu0 %v993
    %1040 = vmatprep.subr.bf16.mxu0 0
    %1041 = vmatpush2.bf16.xpose.msra.mxu0 0
    %1042 = vmatprep.subr.bf16.mxu0 0
    %1043 = vmatpush2.bf16.xpose.msra.mxu0 0
    %1044 = vmatprep.subr.bf16.mxu0 0
    %1045 = vmatpush2.bf16.xpose.msra.mxu0 0
    %1046 = vmatprep.subr.bf16.mxu0 0
    %1047 = vmatpush2.bf16.xpose.msra.mxu0 0
    %1048 = vmatprep.subr.bf16.mxu0 0
    %1049 = vmatpush2.bf16.xpose.msra.mxu0 0
    %1050 = vmatprep.subr.bf16.mxu0 0
    %1051 = vmatpush2.bf16.xpose.msra.mxu0 0
    %1052 = vmatprep.subr.bf16.mxu0 0
    %1053 = vmatpush2.bf16.xpose.msra.mxu0 0
    %1054 = vmatprep.subr.bf16.mxu0 0
    %1055 = vmatpush2.bf16.xpose.msra.mxu0 0
    %1056 = vmatprep.mubr.bf16.mxu0 %v1019
    %1057 = vmatmul.mubr.bf16.gmra.mxu0 %v1018
    %v1058 = vpop.f32.mrf.mxu0
    %v1059 = vadd.f32 %v1001, %v1058
    %v1060 = vpop.f32.mrf.mxu0
    %v1061 = vpop.f32.mrf.mxu0
    %v1062 = vadd.f32 %v1006, %v1061
    %v1063 = vpop.f32.mrf.mxu0
    %1064 = vdwg.mxu0
    %1065 = vmatprep.subr.bf16.mxu0 0
    %1066 = vmatpush1.bf16.xpose.msra.mxu0 0
    %1067 = vmatprep.subr.bf16.mxu0 0
    %1068 = vmatpush1.bf16.xpose.msra.mxu0 0
    %1069 = vmatprep.subr.bf16.mxu0 0
    %1070 = vmatpush1.bf16.xpose.msra.mxu0 0
    %1071 = vmatprep.subr.bf16.mxu0 0
    %1072 = vmatpush1.bf16.xpose.msra.mxu0 0
    %1073 = vmatprep.subr.bf16.mxu0 0
    %1074 = vmatpush1.bf16.xpose.msra.mxu0 0
    %1075 = vmatprep.subr.bf16.mxu0 0
    %1076 = vmatpush1.bf16.xpose.msra.mxu0 0
    %1077 = vmatprep.subr.bf16.mxu0 0
    %1078 = vmatpush1.bf16.xpose.msra.mxu0 0
    %1079 = vmatprep.subr.bf16.mxu0 0
    %1080 = vmatpush1.bf16.xpose.msra.mxu0 %v995
    %1081 = vmatprep.subr.bf16.mxu0 0
    %1082 = vmatpush2.bf16.xpose.msra.mxu0 0
    %1083 = vmatprep.subr.bf16.mxu0 0
    %1084 = vmatpush2.bf16.xpose.msra.mxu0 0
    %1085 = vmatprep.subr.bf16.mxu0 0
    %1086 = vmatpush2.bf16.xpose.msra.mxu0 0
    %1087 = vmatprep.subr.bf16.mxu0 0
    %1088 = vmatpush2.bf16.xpose.msra.mxu0 0
    %1089 = vmatprep.subr.bf16.mxu0 0
    %1090 = vmatpush2.bf16.xpose.msra.mxu0 0
    %1091 = vmatprep.subr.bf16.mxu0 0
    %1092 = vmatpush2.bf16.xpose.msra.mxu0 0
    %1093 = vmatprep.subr.bf16.mxu0 0
    %1094 = vmatpush2.bf16.xpose.msra.mxu0 0
    %1095 = vmatprep.subr.bf16.mxu0 0
    %1096 = vmatpush2.bf16.xpose.msra.mxu0 0
    %1097 = vmatprep.mubr.bf16.mxu0 0
    %1098 = vmatmul.mubr.bf16.gmra.mxu0 %v1020
    %v1099 = vpop.f32.mrf.mxu0
    %v1100 = vadd.f32 %v1059, %v1099
    %v1101 = vpop.f32.mrf.mxu0
    %v1102 = vpop.f32.mrf.mxu0
    %v1103 = vadd.f32 %v1062, %v1102
    %v1104 = vpop.f32.mrf.mxu0
    %1105 = vdwg.mxu0
    %vm1106 = vcmask 64512
    %1107 = vst.msk [vmem:[%s9] sm:$0xff] %vm1106, %v1100
    %vm1108 = vcmask 58368
    %1109 = vst.msk [vmem:[%s9 + $0x8] sm:$0x3] %vm1108, %v1103
    // Predicated region
    $region50: #{tpu_custom_call.1} parent=1 // pred_check
      _
    $region51: #{tpu_custom_call.1} parent=1 // pred_check_branch
      %1111 = sbr.rel (0) target = $region53
    $region52: #{tpu_custom_call.1} parent=1 // pred_region
      _
    $region53: #{tpu_custom_call.1} parent=1 // pred_fallthru
      _
    // Predicated region
    $region54: #{tpu_custom_call.1} parent=1 // pred_check
      _
    $region55: #{tpu_custom_call.1} parent=1 // pred_check_branch
      %1113 = sbr.rel (0) target = $region57
    $region56: #{tpu_custom_call.1} parent=1 // pred_region
      _
    $region57: #{tpu_custom_call.1} parent=1 // pred_fallthru
      _
    %1114 = vsyncpa [#allocation3], 1
    %1115 = vsyncpa [#allocation5], 1

</llo_original>
